<compile_context>
chip_gen: v7x
topology: tpu7x:2x2x1
jax: 0.10.0
libtpu: 0.0.40
codegen_flags: <defaults>
</compile_context>

<pallas_src>
import functools

import jax
import jax.numpy as jnp
from jax.experimental import pallas as pl
from jax.experimental.pallas import tpu as pltpu


def rnn_kernel(emb_ref, wih_ref, whh_ref, b_ref, wfc_ref, bfc_ref,
               out_ref, xproj_ref, h_ref,
               *, t_s, bp, tail_valid, n_chains):
    """One grid step processes a chunk of t_s timesteps.

    emb_ref   : (t_s*Bp, E)   time-major embedded chunk, already 2-D (VMEM, streamed over S)
    wih_ref   : (E, Hp)       input->hidden weight (pre-transposed, zero-padded, resident)
    whh_ref   : (Hp, Hp)      hidden->hidden weight (pre-transposed, zero-padded, resident)
    b_ref     : (1, Hp)       combined bias b_ih + b_hh (zero-padded, resident)
    wfc_ref   : (Hp, Op)      final linear weight (pre-transposed, zero-padded, resident)
    bfc_ref   : (1, Op)       final linear bias (zero-padded, resident)
    out_ref   : (Bp, Op)      logits for the last real timestep (written at last grid step)
    xproj_ref : (t_s*Bp, Hp)  VMEM scratch for the hoisted input projection of this chunk
    h_ref     : (Bp, Hp)      hidden state, persistent VMEM scratch across grid steps
    """
    s = pl.program_id(0)
    last = pl.num_programs(0) - 1

    @pl.when(s == 0)
    def _():
        h_ref[...] = jnp.zeros_like(h_ref)

    # Hoisted input projection: ONE GEMM for all t_s timesteps of the chunk, bias folded in,
    # staged in VMEM scratch so only ~2 vregs stay live across the serial recurrence.
    xproj_ref[...] = (
        jnp.dot(emb_ref[...], wih_ref[...], preferred_element_type=jnp.float32)
        + b_ref[...]
    )

    whh = whh_ref[...]
    cb = bp // n_chains
    # Independent batch sub-chains (register-resident carries).  They are data-independent
    # within a timestep, so the scheduler can overlap one chain's MXU latency with the
    # other's VPU add + EUP tanh.
    hs = [h_ref[pl.ds(c * cb, cb), :] for c in range(n_chains)]

    not_last = s != last
    # Serial recurrence, fully unrolled (t_s static): per step just h @ W_hh + xproj + tanh.
    for t in range(t_s):
        step_always_valid = t < tail_valid  # static: only the padded tail chunk masks
        for c in range(n_chains):
            h_new = jnp.tanh(
                xproj_ref[pl.ds(t * bp + c * cb, cb), :]
                + jnp.dot(hs[c].astype(whh.dtype), whh,
                          preferred_element_type=jnp.float32)
            )
            if step_always_valid:
                hs[c] = h_new
            else:
                # This timestep only exists when this is NOT the (padded) last chunk.
                hs[c] = jnp.where(not_last, h_new, hs[c])

    for c in range(n_chains):
        h_ref[pl.ds(c * cb, cb), :] = hs[c]  # persist across grid steps

    @pl.when(s == last)
    def _():
        # fc(out[:, -1, :]) == fc(h_S)
        out_ref[...] = (
            jnp.dot(h_ref[...], wfc_ref[...], preferred_element_type=jnp.float32)
            + bfc_ref[...]
        )


def _round_up(v, m):
    return ((v + m - 1) // m) * m


def _vmem_budget_bytes(t_s, bp, e, hp, op, mm_itemsize):
    """Explicit VMEM budget (bytes) for the kernel's working set, with headroom."""
    f32 = 4
    emb_stream = 2 * t_s * bp * e * mm_itemsize            # streamed chunk, double-buffered
    weights = (e * hp + hp * hp) * mm_itemsize + (hp + hp * op + op) * f32  # single-buffered
    scratch = t_s * bp * hp * f32 + bp * hp * f32           # xproj staging + hidden state
    out = 2 * bp * op * f32
    total = emb_stream + weights + scratch + out
    # 1.5x headroom for compiler internals, clamped to a sane range.
    return int(min(64 * 1024 * 1024, max(4 * 1024 * 1024, total * 3 // 2 + (1 << 20))))


def rnn_forward(x, emb_table, w_ih, w_hh, b_ih, b_hh, w_fc, b_fc,
                *, t_s=None, use_bf16=False):
    """x: (B, S) int32 token ids. Returns (B, output_size) float32 logits."""
    B, S = x.shape
    E = emb_table.shape[1]
    H = w_hh.shape[0]
    O = w_fc.shape[0]

    # Pad to vreg-tile-friendly shapes (f32: 8 sublanes x 128 lanes).
    Bp = _round_up(B, 8)
    Hp = _round_up(H, 128)
    Op = _round_up(O, 128)

    # Timestep chunk size: amortize per-grid-step overhead; ragged tail handled by in-kernel
    # masking, so any S (including primes) gets a full-size chunk.
    if t_s is None:
        t_s = min(S, 32)
    S_pad = _round_up(S, t_s)
    num_chunks = S_pad // t_s
    tail_valid = S - (num_chunks - 1) * t_s   # valid timesteps in the last chunk

    # Two interleaved batch sub-chains only when each chain is a full sublane tile.
    n_chains = 2 if (Bp >= 16 and Bp % 16 == 0) else 1

    mm_dtype = jnp.bfloat16 if use_bf16 else jnp.float32
    mm_itemsize = jnp.dtype(mm_dtype).itemsize

    # Embedding gather directly time-major and already flattened to 2-D (S_pad*Bp, E), so the
    # kernel never reshapes.  Under jit the gather+pad+reshape fuse into a single HBM write.
    emb_tm = emb_table[x.T].astype(mm_dtype)                       # (S, B, E)
    emb_tm = jnp.pad(emb_tm, ((0, S_pad - S), (0, Bp - B), (0, 0)))  # (S_pad, Bp, E)
    emb_flat = emb_tm.reshape(S_pad * Bp, E)

    # Pre-transpose + zero-pad weights so the kernel computes h @ W with lane-dense layouts.
    # Padded hidden columns stay exactly 0 (zero weight columns, zero bias), padded output
    # columns / batch rows are sliced off below.
    wih_t = jnp.pad(w_ih.T.astype(mm_dtype), ((0, 0), (0, Hp - H)))          # (E, Hp)
    whh_t = jnp.pad(w_hh.T.astype(mm_dtype), ((0, Hp - H), (0, Hp - H)))     # (Hp, Hp)
    b = jnp.pad((b_ih + b_hh).astype(jnp.float32).reshape(1, H),
                ((0, 0), (0, Hp - H)))                                       # (1, Hp)
    wfc_t = jnp.pad(w_fc.T.astype(jnp.float32), ((0, Hp - H), (0, Op - O)))  # (Hp, Op)
    bfc = jnp.pad(b_fc.astype(jnp.float32).reshape(1, O),
                  ((0, 0), (0, Op - O)))                                     # (1, Op)

    kernel = functools.partial(
        rnn_kernel, t_s=t_s, bp=Bp, tail_valid=tail_valid, n_chains=n_chains)

    # Resident weights never change across the S grid -> don't double-buffer them.
    weight_mode = pl.Buffered(1)

    out_padded = pl.pallas_call(
        kernel,
        out_shape=jax.ShapeDtypeStruct((Bp, Op), jnp.float32),
        grid_spec=pltpu.PrefetchScalarGridSpec(
            num_scalar_prefetch=0,
            grid=(num_chunks,),
            in_specs=[
                # Streamed embedded chunk: default double-buffering over the S grid.
                pl.BlockSpec((t_s * Bp, E), lambda s: (s, 0)),
                # Resident weights: single-buffered.
                pl.BlockSpec((E, Hp), lambda s: (0, 0), pipeline_mode=weight_mode),
                pl.BlockSpec((Hp, Hp), lambda s: (0, 0), pipeline_mode=weight_mode),
                pl.BlockSpec((1, Hp), lambda s: (0, 0), pipeline_mode=weight_mode),
                pl.BlockSpec((Hp, Op), lambda s: (0, 0), pipeline_mode=weight_mode),
                pl.BlockSpec((1, Op), lambda s: (0, 0), pipeline_mode=weight_mode),
            ],
            out_specs=pl.BlockSpec((Bp, Op), lambda s: (0, 0)),
            scratch_shapes=[
                pltpu.VMEM((t_s * Bp, Hp), jnp.float32),   # xproj staging (per chunk)
                pltpu.VMEM((Bp, Hp), jnp.float32),         # persistent hidden state
            ],
        ),
        compiler_params=pltpu.CompilerParams(
            dimension_semantics=("arbitrary",),            # recurrence is serial over S
            vmem_limit_bytes=_vmem_budget_bytes(t_s, Bp, E, Hp, Op, mm_itemsize),
        ),
    )(emb_flat, wih_t, whh_t, b, wfc_t, bfc)

    # Strip layout padding (padded batch rows / output columns carry no real data).
    return out_padded[:B, :O]


def rnn_reference(x, emb_table, w_ih, w_hh, b_ih, b_hh, w_fc, b_fc):
    """Pure-JAX reference of the PyTorch forward pass."""
    B, S = x.shape
    H = w_hh.shape[0]
    emb = emb_table[x]  # (B, S, E)
    h = jnp.zeros((B, H), jnp.float32)
    for t in range(S):
        h = jnp.tanh(emb[:, t, :] @ w_ih.T + b_ih + h @ w_hh.T + b_hh)
    return h @ w_fc.T + b_fc


if __name__ == "__main__":
    # Small shapes consistent with the module's forward.
    vocab_size = 20
    emb_size = 32
    padding_idx = 0
    hidden_size = 32
    output_size = 8
    batch = 4
    seq = 8

    key = jax.random.PRNGKey(0)
    k_emb, k_wih, k_whh, k_bih, k_bhh, k_wfc, k_bfc, k_x = jax.random.split(key, 8)

    # Deterministic parameter init (synthetic weights, PyTorch-like small values).
    emb_table = 0.1 * jax.random.normal(k_emb, (vocab_size, emb_size), jnp.float32)
    emb_table = emb_table.at[padding_idx].set(0.0)  # padding_idx row is zero
    w_ih = 0.1 * jax.random.normal(k_wih, (hidden_size, emb_size), jnp.float32)
    w_hh = 0.1 * jax.random.normal(k_whh, (hidden_size, hidden_size), jnp.float32)
    b_ih = 0.1 * jax.random.normal(k_bih, (hidden_size,), jnp.float32)
    b_hh = 0.1 * jax.random.normal(k_bhh, (hidden_size,), jnp.float32)
    w_fc = 0.1 * jax.random.normal(k_wfc, (output_size, hidden_size), jnp.float32)
    b_fc = 0.1 * jax.random.normal(k_bfc, (output_size,), jnp.float32)

    # Token ids (include some padding_idx entries).
    x = jax.random.randint(k_x, (batch, seq), 0, vocab_size, dtype=jnp.int32)

    out = jax.jit(rnn_forward)(x, emb_table, w_ih, w_hh, b_ih, b_hh, w_fc, b_fc)
    out = jax.block_until_ready(out)

    ref = rnn_reference(x, emb_table, w_ih, w_hh, b_ih, b_hh, w_fc, b_fc)
    assert out.shape == (batch, output_size)
    assert jnp.allclose(out, ref, atol=1e-5, rtol=1e-5), "mismatch vs reference"

    print("KERNEL_OK")
</pallas_src>

<mosaic_0001>
module attributes {stable_mosaic.version = 11 : i64} {
  func.func @rnn_kernel(%arg0: i32, %arg1: memref<64x32xf32, #tpu.memory_space<vmem>>, %arg2: memref<32x128xf32, #tpu.memory_space<vmem>>, %arg3: memref<128x128xf32, #tpu.memory_space<vmem>>, %arg4: memref<1x128xf32, #tpu.memory_space<vmem>>, %arg5: memref<128x128xf32, #tpu.memory_space<vmem>>, %arg6: memref<1x128xf32, #tpu.memory_space<vmem>>, %arg7: memref<8x128xf32, #tpu.memory_space<vmem>>, %arg8: memref<64x128xf32, #tpu.memory_space<vmem>>, %arg9: memref<8x128xf32, #tpu.memory_space<vmem>>) attributes {dimension_semantics = [#tpu.dimension_semantics<arbitrary>], iteration_bounds = array<i64: 1>, scalar_prefetch = 0 : i64, scratch_operands = 2 : i64, tpu.core_type = #tpu.core_type<tc>, window_params = [{transform_indices = @transform_0, window_bounds = array<i64: 64, 32>}, {pipeline_mode = #tpu.pipeline_mode<synchronous>, transform_indices = @transform_1, window_bounds = array<i64: 32, 128>}, {pipeline_mode = #tpu.pipeline_mode<synchronous>, transform_indices = @transform_2, window_bounds = array<i64: 128, 128>}, {pipeline_mode = #tpu.pipeline_mode<synchronous>, transform_indices = @transform_3, window_bounds = array<i64: 1, 128>}, {pipeline_mode = #tpu.pipeline_mode<synchronous>, transform_indices = @transform_4, window_bounds = array<i64: 128, 128>}, {pipeline_mode = #tpu.pipeline_mode<synchronous>, transform_indices = @transform_5, window_bounds = array<i64: 1, 128>}, {pipeline_mode = #tpu.pipeline_mode<synchronous>, transform_indices = @transform_6, window_bounds = array<i64: 8, 128>}]} {
    %c0_i32 = arith.constant 0 : i32
    %0 = arith.cmpi eq, %arg0, %c0_i32 : i32
    %1 = arith.extui %0 : i1 to i32
    %c0_i32_0 = arith.constant 0 : i32
    %2 = arith.cmpi ne, %1, %c0_i32_0 : i32
    scf.if %2 {
      %cst_33 = arith.constant 0.000000e+00 : f32
      %48 = vector.broadcast %cst_33 : f32 to vector<8x128xf32>
      %c0_34 = arith.constant 0 : index
      %c0_35 = arith.constant 0 : index
      %49 = vector.load %arg9[%c0_34, %c0_35] : memref<8x128xf32, #tpu.memory_space<vmem>>, vector<8x128xf32>
      tpu.vector_store %arg9[%c0_34, %c0_35], %48 {strides = array<i32>} : memref<8x128xf32, #tpu.memory_space<vmem>>, vector<8x128xf32>,
    } else {
    }
    %c0 = arith.constant 0 : index
    %c0_1 = arith.constant 0 : index
    %3 = vector.load %arg1[%c0, %c0_1] : memref<64x32xf32, #tpu.memory_space<vmem>>, vector<64x32xf32>
    %c0_2 = arith.constant 0 : index
    %c0_3 = arith.constant 0 : index
    %4 = vector.load %arg2[%c0_2, %c0_3] : memref<32x128xf32, #tpu.memory_space<vmem>>, vector<32x128xf32>
    %cst = arith.constant dense<0.000000e+00> : vector<64x128xf32>
    %5 = tpu.matmul %3, %4, %cst {dimension_numbers = #tpu.dot_dimension_numbers<[1], [0], [0], [1], [0, 0, 1, 1], [], []>} : vector<64x32xf32>, vector<32x128xf32>, vector<64x128xf32> -> vector<64x128xf32>
    %c0_4 = arith.constant 0 : index
    %c0_5 = arith.constant 0 : index
    %6 = vector.load %arg4[%c0_4, %c0_5] : memref<1x128xf32, #tpu.memory_space<vmem>>, vector<1x128xf32>
    %7 = vector.broadcast %6 : vector<1x128xf32> to vector<64x128xf32>
    %8 = arith.addf %5, %7 : vector<64x128xf32>
    %c0_6 = arith.constant 0 : index
    %c0_7 = arith.constant 0 : index
    %9 = vector.load %arg8[%c0_6, %c0_7] : memref<64x128xf32, #tpu.memory_space<vmem>>, vector<64x128xf32>
    tpu.vector_store %arg8[%c0_6, %c0_7], %8 {strides = array<i32>} : memref<64x128xf32, #tpu.memory_space<vmem>>, vector<64x128xf32>,
    %c0_8 = arith.constant 0 : index
    %c0_9 = arith.constant 0 : index
    %10 = vector.load %arg3[%c0_8, %c0_9] : memref<128x128xf32, #tpu.memory_space<vmem>>, vector<128x128xf32>
    %c0_10 = arith.constant 0 : index
    %c0_11 = arith.constant 0 : index
    %11 = vector.load %arg9[%c0_10, %c0_11] : memref<8x128xf32, #tpu.memory_space<vmem>>, vector<8x128xf32>
    %c0_12 = arith.constant 0 : index
    %c0_13 = arith.constant 0 : index
    %12 = vector.load %arg8[%c0_12, %c0_13] : memref<64x128xf32, #tpu.memory_space<vmem>>, vector<8x128xf32>
    %cst_14 = arith.constant dense<0.000000e+00> : vector<8x128xf32>
    %13 = tpu.matmul %11, %10, %cst_14 {dimension_numbers = #tpu.dot_dimension_numbers<[1], [0], [0], [1], [0, 0, 1, 1], [], []>} : vector<8x128xf32>, vector<128x128xf32>, vector<8x128xf32> -> vector<8x128xf32>
    %14 = arith.addf %12, %13 : vector<8x128xf32>
    %15 = math.tanh %14 : vector<8x128xf32>
    %c8 = arith.constant 8 : index
    %c0_15 = arith.constant 0 : index
    %16 = vector.load %arg8[%c8, %c0_15] : memref<64x128xf32, #tpu.memory_space<vmem>>, vector<8x128xf32>
    %cst_16 = arith.constant dense<0.000000e+00> : vector<8x128xf32>
    %17 = tpu.matmul %15, %10, %cst_16 {dimension_numbers = #tpu.dot_dimension_numbers<[1], [0], [0], [1], [0, 0, 1, 1], [], []>} : vector<8x128xf32>, vector<128x128xf32>, vector<8x128xf32> -> vector<8x128xf32>
    %18 = arith.addf %16, %17 : vector<8x128xf32>
    %19 = math.tanh %18 : vector<8x128xf32>
    %c16 = arith.constant 16 : index
    %c0_17 = arith.constant 0 : index
    %20 = vector.load %arg8[%c16, %c0_17] : memref<64x128xf32, #tpu.memory_space<vmem>>, vector<8x128xf32>
    %cst_18 = arith.constant dense<0.000000e+00> : vector<8x128xf32>
    %21 = tpu.matmul %19, %10, %cst_18 {dimension_numbers = #tpu.dot_dimension_numbers<[1], [0], [0], [1], [0, 0, 1, 1], [], []>} : vector<8x128xf32>, vector<128x128xf32>, vector<8x128xf32> -> vector<8x128xf32>
    %22 = arith.addf %20, %21 : vector<8x128xf32>
    %23 = math.tanh %22 : vector<8x128xf32>
    %c24 = arith.constant 24 : index
    %c0_19 = arith.constant 0 : index
    %24 = vector.load %arg8[%c24, %c0_19] : memref<64x128xf32, #tpu.memory_space<vmem>>, vector<8x128xf32>
    %cst_20 = arith.constant dense<0.000000e+00> : vector<8x128xf32>
    %25 = tpu.matmul %23, %10, %cst_20 {dimension_numbers = #tpu.dot_dimension_numbers<[1], [0], [0], [1], [0, 0, 1, 1], [], []>} : vector<8x128xf32>, vector<128x128xf32>, vector<8x128xf32> -> vector<8x128xf32>
    %26 = arith.addf %24, %25 : vector<8x128xf32>
    %27 = math.tanh %26 : vector<8x128xf32>
    %c32 = arith.constant 32 : index
    %c0_21 = arith.constant 0 : index
    %28 = vector.load %arg8[%c32, %c0_21] : memref<64x128xf32, #tpu.memory_space<vmem>>, vector<8x128xf32>
    %cst_22 = arith.constant dense<0.000000e+00> : vector<8x128xf32>
    %29 = tpu.matmul %27, %10, %cst_22 {dimension_numbers = #tpu.dot_dimension_numbers<[1], [0], [0], [1], [0, 0, 1, 1], [], []>} : vector<8x128xf32>, vector<128x128xf32>, vector<8x128xf32> -> vector<8x128xf32>
    %30 = arith.addf %28, %29 : vector<8x128xf32>
    %31 = math.tanh %30 : vector<8x128xf32>
    %c40 = arith.constant 40 : index
    %c0_23 = arith.constant 0 : index
    %32 = vector.load %arg8[%c40, %c0_23] : memref<64x128xf32, #tpu.memory_space<vmem>>, vector<8x128xf32>
    %cst_24 = arith.constant dense<0.000000e+00> : vector<8x128xf32>
    %33 = tpu.matmul %31, %10, %cst_24 {dimension_numbers = #tpu.dot_dimension_numbers<[1], [0], [0], [1], [0, 0, 1, 1], [], []>} : vector<8x128xf32>, vector<128x128xf32>, vector<8x128xf32> -> vector<8x128xf32>
    %34 = arith.addf %32, %33 : vector<8x128xf32>
    %35 = math.tanh %34 : vector<8x128xf32>
    %c48 = arith.constant 48 : index
    %c0_25 = arith.constant 0 : index
    %36 = vector.load %arg8[%c48, %c0_25] : memref<64x128xf32, #tpu.memory_space<vmem>>, vector<8x128xf32>
    %cst_26 = arith.constant dense<0.000000e+00> : vector<8x128xf32>
    %37 = tpu.matmul %35, %10, %cst_26 {dimension_numbers = #tpu.dot_dimension_numbers<[1], [0], [0], [1], [0, 0, 1, 1], [], []>} : vector<8x128xf32>, vector<128x128xf32>, vector<8x128xf32> -> vector<8x128xf32>
    %38 = arith.addf %36, %37 : vector<8x128xf32>
    %39 = math.tanh %38 : vector<8x128xf32>
    %c56 = arith.constant 56 : index
    %c0_27 = arith.constant 0 : index
    %40 = vector.load %arg8[%c56, %c0_27] : memref<64x128xf32, #tpu.memory_space<vmem>>, vector<8x128xf32>
    %cst_28 = arith.constant dense<0.000000e+00> : vector<8x128xf32>
    %41 = tpu.matmul %39, %10, %cst_28 {dimension_numbers = #tpu.dot_dimension_numbers<[1], [0], [0], [1], [0, 0, 1, 1], [], []>} : vector<8x128xf32>, vector<128x128xf32>, vector<8x128xf32> -> vector<8x128xf32>
    %42 = arith.addf %40, %41 : vector<8x128xf32>
    %43 = math.tanh %42 : vector<8x128xf32>
    %c0_29 = arith.constant 0 : index
    %c0_30 = arith.constant 0 : index
    %44 = vector.load %arg9[%c0_29, %c0_30] : memref<8x128xf32, #tpu.memory_space<vmem>>, vector<8x128xf32>
    tpu.vector_store %arg9[%c0_29, %c0_30], %43 {strides = array<i32>} : memref<8x128xf32, #tpu.memory_space<vmem>>, vector<8x128xf32>,
    %c0_i32_31 = arith.constant 0 : i32
    %45 = arith.cmpi eq, %arg0, %c0_i32_31 : i32
    %46 = arith.extui %45 : i1 to i32
    %c0_i32_32 = arith.constant 0 : i32
    %47 = arith.cmpi ne, %46, %c0_i32_32 : i32
    scf.if %47 {
      %c0_33 = arith.constant 0 : index
      %c0_34 = arith.constant 0 : index
      %48 = vector.load %arg9[%c0_33, %c0_34] : memref<8x128xf32, #tpu.memory_space<vmem>>, vector<8x128xf32>
      %c0_35 = arith.constant 0 : index
      %c0_36 = arith.constant 0 : index
      %49 = vector.load %arg5[%c0_35, %c0_36] : memref<128x128xf32, #tpu.memory_space<vmem>>, vector<128x128xf32>
      %cst_37 = arith.constant dense<0.000000e+00> : vector<8x128xf32>
      %50 = tpu.matmul %48, %49, %cst_37 {dimension_numbers = #tpu.dot_dimension_numbers<[1], [0], [0], [1], [0, 0, 1, 1], [], []>} : vector<8x128xf32>, vector<128x128xf32>, vector<8x128xf32> -> vector<8x128xf32>
      %c0_38 = arith.constant 0 : index
      %c0_39 = arith.constant 0 : index
      %51 = vector.load %arg6[%c0_38, %c0_39] : memref<1x128xf32, #tpu.memory_space<vmem>>, vector<1x128xf32>
      %52 = vector.broadcast %51 : vector<1x128xf32> to vector<8x128xf32>
      %53 = arith.addf %50, %52 : vector<8x128xf32>
      %c0_40 = arith.constant 0 : index
      %c0_41 = arith.constant 0 : index
      %54 = vector.load %arg7[%c0_40, %c0_41] : memref<8x128xf32, #tpu.memory_space<vmem>>, vector<8x128xf32>
      tpu.vector_store %arg7[%c0_40, %c0_41], %53 {strides = array<i32>} : memref<8x128xf32, #tpu.memory_space<vmem>>, vector<8x128xf32>,
    } else {
    }
    return
  }
  func.func @transform_0(%arg0: i32) -> (i32, i32) {
    %c0_i32 = arith.constant 0 : i32
    %c0_i32_0 = arith.constant 0 : i32
    return %arg0, %c0_i32 : i32, i32
  }
  func.func @transform_1(%arg0: i32) -> (i32, i32) {
    %c0_i32 = arith.constant 0 : i32
    %c0_i32_0 = arith.constant 0 : i32
    %c0_i32_1 = arith.constant 0 : i32
    return %c0_i32, %c0_i32_0 : i32, i32
  }
  func.func @transform_2(%arg0: i32) -> (i32, i32) {
    %c0_i32 = arith.constant 0 : i32
    %c0_i32_0 = arith.constant 0 : i32
    %c0_i32_1 = arith.constant 0 : i32
    return %c0_i32, %c0_i32_0 : i32, i32
  }
  func.func @transform_3(%arg0: i32) -> (i32, i32) {
    %c0_i32 = arith.constant 0 : i32
    %c0_i32_0 = arith.constant 0 : i32
    %c0_i32_1 = arith.constant 0 : i32
    return %c0_i32, %c0_i32_0 : i32, i32
  }
  func.func @transform_4(%arg0: i32) -> (i32, i32) {
    %c0_i32 = arith.constant 0 : i32
    %c0_i32_0 = arith.constant 0 : i32
    %c0_i32_1 = arith.constant 0 : i32
    return %c0_i32, %c0_i32_0 : i32, i32
  }
  func.func @transform_5(%arg0: i32) -> (i32, i32) {
    %c0_i32 = arith.constant 0 : i32
    %c0_i32_0 = arith.constant 0 : i32
    %c0_i32_1 = arith.constant 0 : i32
    return %c0_i32, %c0_i32_0 : i32, i32
  }
  func.func @transform_6(%arg0: i32) -> (i32, i32) {
    %c0_i32 = arith.constant 0 : i32
    %c0_i32_0 = arith.constant 0 : i32
    %c0_i32_1 = arith.constant 0 : i32
    return %c0_i32, %c0_i32_0 : i32, i32
  }
}

</mosaic_0001>

<llo_original>
// kernel: rnn_forward.1
$region0: #{rnn_forward.1}
  #allocation0 [shape = 'u32[]', space=smem, size = 0x4, offset = 0x4, fixed_abs, tag = 'smem constant byte address 0x4 - core index']
  #allocation1 [shape = 'u32[144,128]{1,0:T(1,128)}', space=vmem, size = 0x12000, scoped, tag = 'internal scratch']
  #allocation2 [shape = 'f32[64,128]{1,0:T(8,128)}', space=vmem, size = 0x8000, scoped, tag = 'scratch operand']
  #allocation3 [shape = 'f32[8,128]{1,0:T(8,128)}', space=vmem, size = 0x1000, scoped, tag = 'scratch operand']
  %s0 = inlined_call_operand.vmem [shape: f32[64,32], index: 0, kind: input, shape index: {}]
  %s1 = inlined_call_operand.vmem [shape: f32[32,128], index: 1, kind: input, shape index: {}]
  %s2 = inlined_call_operand.vmem [shape: f32[128,128], index: 2, kind: input, shape index: {}]
  %s3 = inlined_call_operand.vmem [shape: f32[1,128], index: 3, kind: input, shape index: {}]
  %s4 = inlined_call_operand.vmem [shape: f32[128,128], index: 4, kind: input, shape index: {}]
  %s5 = inlined_call_operand.vmem [shape: f32[1,128], index: 5, kind: input, shape index: {}]
  %s6 = inlined_call_operand.vmem [shape: f32[8,128], index: 6, kind: output, shape index: {}]
  %s7 = sld [smem:[#allocation0]]
  $region42: #{rnn_forward.1} parent=0
    _
  %s9 = ssub.s32 1, %s7
  %s10 = scalar_select 0, %s9, %s7
  // Predicated region
  $region2: #{rnn_forward.1} parent=0 // pred_check
    _
  $region3: #{rnn_forward.1} parent=0 // pred_check_branch
    %12 = sbr.rel (0) target = $region5
  $region4: #{rnn_forward.1} parent=0 // pred_region
    _
  $region5: #{rnn_forward.1} parent=0 // pred_fallthru
    _
  // Predicated region
  $region6: #{rnn_forward.1} parent=0 // pred_check
    _
  $region7: #{rnn_forward.1} parent=0 // pred_check_branch
    %14 = sbr.rel (0) target = $region9
  $region8: #{rnn_forward.1} parent=0 // pred_region
    _
  $region9: #{rnn_forward.1} parent=0 // pred_fallthru
    _
  // Predicated region
  $region10: #{rnn_forward.1} parent=0 // pred_check
    _
  $region11: #{rnn_forward.1} parent=0 // pred_check_branch
    %16 = sbr.rel (0) target = $region13
  $region12: #{rnn_forward.1} parent=0 // pred_region
    _
  $region13: #{rnn_forward.1} parent=0 // pred_fallthru
    _
  // Predicated region
  $region14: #{rnn_forward.1} parent=0 // pred_check
    _
  $region15: #{rnn_forward.1} parent=0 // pred_check_branch
    %18 = sbr.rel (0) target = $region17
  $region16: #{rnn_forward.1} parent=0 // pred_region
    _
  $region17: #{rnn_forward.1} parent=0 // pred_fallthru
    _
  // Predicated region
  $region18: #{rnn_forward.1} parent=0 // pred_check
    _
  $region19: #{rnn_forward.1} parent=0 // pred_check_branch
    %20 = sbr.rel (0) target = $region21
  $region20: #{rnn_forward.1} parent=0 // pred_region
    _
  $region21: #{rnn_forward.1} parent=0 // pred_fallthru
    _
  // Predicated region
  $region22: #{rnn_forward.1} parent=0 // pred_check
    _
  $region23: #{rnn_forward.1} parent=0 // pred_check_branch
    %22 = sbr.rel (0) target = $region25
  $region24: #{rnn_forward.1} parent=0 // pred_region
    _
  $region25: #{rnn_forward.1} parent=0 // pred_fallthru
    _
  %p23 = scmp.eq.s32.totalorder 0, 0
  // Predicated region
  $region26: #{rnn_forward.1} parent=0 // pred_check
    %p24 = pneg %p23
  $region27: #{rnn_forward.1} parent=0 // pred_check_branch
    %26 = sbr.rel (%p24) target = $region29
  $region28: #{rnn_forward.1} parent=0 // pred_region
    %27 = vst [vmem:[#allocation3] sm:$0xff] 0.0
  $region29: #{rnn_forward.1} parent=0 // pred_fallthru
    _
  %v28 = vld [vmem:[%s0] sm:$0xff]
  %v29 = vld [vmem:[%s0 + $0x8] sm:$0xff]
  %v30 = vld [vmem:[%s0 + $0x10] sm:$0xff]
  %v31 = vld [vmem:[%s0 + $0x18] sm:$0xff]
  %v32 = vld [vmem:[%s0 + $0x20] sm:$0xff]
  %v33 = vld [vmem:[%s0 + $0x28] sm:$0xff]
  %v34 = vld [vmem:[%s0 + $0x30] sm:$0xff]
  %v35 = vld [vmem:[%s0 + $0x38] sm:$0xff]
  %v36 = vld [vmem:[%s1] sm:$0xff]
  %v37 = vld [vmem:[%s1 + $0x8] sm:$0xff]
  %v38 = vld [vmem:[%s1 + $0x10] sm:$0xff]
  %v39 = vld [vmem:[%s1 + $0x18] sm:$0xff]
  %v40 = vld [vmem:[%s3] sm:$0x1]
  %v42 = vlaneseq
  %v43 = vshrl.u32 %v42, 7
  %v44 = vsub.s32 0, %v43
  %v45 = vrot.slane %v40, %v44
  %vm47 = vcmask 261120
  %v49 = vsel %vm47, %v28, 0
  %v52 = vsel %vm47, %v29, 0
  %v55 = vsel %vm47, %v30, 0
  %v58 = vsel %vm47, %v31, 0
  %v61 = vsel %vm47, %v32, 0
  %v64 = vsel %vm47, %v33, 0
  %v67 = vsel %vm47, %v34, 0
  %v70 = vsel %vm47, %v35, 0
  %72 = vmatprep.subr.mxu0 0.0
  %73 = vmatpush1.msra.mxu0 %v36
  %74 = vmatprep.subr.mxu0 0.0
  %75 = vmatpush1.msra.mxu0 %v37
  %76 = vmatprep.subr.mxu0 0.0
  %77 = vmatpush1.msra.mxu0 %v38
  %78 = vmatprep.subr.mxu0 0.0
  %79 = vmatpush1.msra.mxu0 %v39
  %80 = vmatprep.subr.mxu0 0.0
  %81 = vmatpush1.msra.mxu0 0.0
  %82 = vmatprep.subr.mxu0 0.0
  %83 = vmatpush1.msra.mxu0 0.0
  %84 = vmatprep.subr.mxu0 0.0
  %85 = vmatpush1.msra.mxu0 0.0
  %86 = vmatprep.subr.mxu0 0.0
  %87 = vmatpush1.msra.mxu0 0.0
  %88 = vmatprep.subr.mxu0 0.0
  %89 = vmatpush1.msra.mxu0 0.0
  %90 = vmatprep.subr.mxu0 0.0
  %91 = vmatpush1.msra.mxu0 0.0
  %92 = vmatprep.subr.mxu0 0.0
  %93 = vmatpush1.msra.mxu0 0.0
  %94 = vmatprep.subr.mxu0 0.0
  %95 = vmatpush1.msra.mxu0 0.0
  %96 = vmatprep.subr.mxu0 0.0
  %97 = vmatpush1.msra.mxu0 0.0
  %98 = vmatprep.subr.mxu0 0.0
  %99 = vmatpush1.msra.mxu0 0.0
  %100 = vmatprep.subr.mxu0 0.0
  %101 = vmatpush1.msra.mxu0 0.0
  %102 = vmatprep.subr.mxu0 0.0
  %103 = vmatpush1.msra.mxu0 0.0
  %104 = vmatprep.subr.mxu0 0.0
  %105 = vmatpush1.msra.mxu0 0.0
  %106 = vmatprep.subr.mxu0 0.0
  %107 = vmatpush1.msra.mxu0 0.0
  %108 = vmatprep.subr.mxu0 0.0
  %109 = vmatpush1.msra.mxu0 0.0
  %110 = vmatprep.subr.mxu0 0.0
  %111 = vmatpush1.msra.mxu0 0.0
  %112 = vmatprep.subr.mxu0 0.0
  %113 = vmatpush1.msra.mxu0 0.0
  %114 = vmatprep.subr.mxu0 0.0
  %115 = vmatpush1.msra.mxu0 0.0
  %116 = vmatprep.subr.mxu0 0.0
  %117 = vmatpush1.msra.mxu0 0.0
  %118 = vmatprep.subr.mxu0 0.0
  %119 = vmatpush1.msra.mxu0 0.0
  %120 = vmatprep.subr.mxu0 0.0
  %121 = vmatpush1.msra.mxu0 0.0
  %122 = vmatprep.subr.mxu0 0.0
  %123 = vmatpush1.msra.mxu0 0.0
  %124 = vmatprep.subr.mxu0 0.0
  %125 = vmatpush1.msra.mxu0 0.0
  %126 = vmatprep.subr.mxu0 0.0
  %127 = vmatpush1.msra.mxu0 0.0
  %128 = vmatprep.subr.mxu0 0.0
  %129 = vmatpush1.msra.mxu0 0.0
  %130 = vmatprep.subr.mxu0 0.0
  %131 = vmatpush1.msra.mxu0 0.0
  %132 = vmatprep.subr.mxu0 0.0
  %133 = vmatpush1.msra.mxu0 0.0
  %134 = vmatprep.subr.mxu0 0.0
  %135 = vmatpush1.msra.mxu0 0.0
  %136 = vmatprep.mubr.f32.mxu0 0.0
  %137 = vmatmul.mubr.f32.gmra.mrb[0].mxu0 %v49
  %v138 = vpop.f32.mrb[0].mxu0
  %v139 = vadd.f32 %v45, %v138
  %v140 = vpop.f32.mrb[0].mxu0
  %141 = vmatprep.mubr.f32.mxu0 0.0
  %142 = vmatmul.mubr.f32.gmra.mrb[0].mxu0 %v52
  %v143 = vpop.f32.mrb[0].mxu0
  %v144 = vadd.f32 %v45, %v143
  %v145 = vpop.f32.mrb[0].mxu0
  %146 = vmatprep.mubr.f32.mxu0 0.0
  %147 = vmatmul.mubr.f32.gmra.mrb[0].mxu0 %v55
  %v148 = vpop.f32.mrb[0].mxu0
  %v149 = vadd.f32 %v45, %v148
  %v150 = vpop.f32.mrb[0].mxu0
  %151 = vmatprep.mubr.f32.mxu0 0.0
  %152 = vmatmul.mubr.f32.gmra.mrb[0].mxu0 %v58
  %v153 = vpop.f32.mrb[0].mxu0
  %v154 = vadd.f32 %v45, %v153
  %v155 = vpop.f32.mrb[0].mxu0
  %156 = vmatprep.mubr.f32.mxu0 0.0
  %157 = vmatmul.mubr.f32.gmra.mrb[0].mxu0 %v61
  %v158 = vpop.f32.mrb[0].mxu0
  %v159 = vadd.f32 %v45, %v158
  %v160 = vpop.f32.mrb[0].mxu0
  %161 = vmatprep.mubr.f32.mxu0 0.0
  %162 = vmatmul.mubr.f32.gmra.mrb[0].mxu0 %v64
  %v163 = vpop.f32.mrb[0].mxu0
  %v164 = vadd.f32 %v45, %v163
  %v165 = vpop.f32.mrb[0].mxu0
  %166 = vmatprep.mubr.f32.mxu0 0.0
  %167 = vmatmul.mubr.f32.gmra.mrb[0].mxu0 %v67
  %v168 = vpop.f32.mrb[0].mxu0
  %v169 = vadd.f32 %v45, %v168
  %v170 = vpop.f32.mrb[0].mxu0
  %171 = vmatprep.mubr.f32.mxu0 0.0
  %172 = vmatmul.mubr.f32.gmra.mrb[0].mxu0 %v70
  %v173 = vpop.f32.mrb[0].mxu0
  %v174 = vadd.f32 %v45, %v173
  %v175 = vpop.f32.mrb[0].mxu0
  %176 = vdwg.mxu0
  %177 = vst [vmem:[#allocation2] sm:$0xff] %v139
  %178 = vst [vmem:[#allocation2 + $0x8] sm:$0xff] %v144
  %179 = vst [vmem:[#allocation2 + $0x10] sm:$0xff] %v149
  %180 = vst [vmem:[#allocation2 + $0x18] sm:$0xff] %v154
  %181 = vst [vmem:[#allocation2 + $0x20] sm:$0xff] %v159
  %182 = vst [vmem:[#allocation2 + $0x28] sm:$0xff] %v164
  %183 = vst [vmem:[#allocation2 + $0x30] sm:$0xff] %v169
  %184 = vst [vmem:[#allocation2 + $0x38] sm:$0xff] %v174
  %v185 = vld [vmem:[%s2] sm:$0xff]
  %v186 = vld [vmem:[%s2 + $0x8] sm:$0xff]
  %v187 = vld [vmem:[%s2 + $0x10] sm:$0xff]
  %v188 = vld [vmem:[%s2 + $0x18] sm:$0xff]
  %v189 = vld [vmem:[%s2 + $0x20] sm:$0xff]
  %v190 = vld [vmem:[%s2 + $0x28] sm:$0xff]
  %v191 = vld [vmem:[%s2 + $0x30] sm:$0xff]
  %v192 = vld [vmem:[%s2 + $0x38] sm:$0xff]
  %v193 = vld [vmem:[%s2 + $0x40] sm:$0xff]
  %v194 = vld [vmem:[%s2 + $0x48] sm:$0xff]
  %v195 = vld [vmem:[%s2 + $0x50] sm:$0xff]
  %v196 = vld [vmem:[%s2 + $0x58] sm:$0xff]
  %v197 = vld [vmem:[%s2 + $0x60] sm:$0xff]
  %v198 = vld [vmem:[%s2 + $0x68] sm:$0xff]
  %v199 = vld [vmem:[%s2 + $0x70] sm:$0xff]
  %v200 = vld [vmem:[%s2 + $0x78] sm:$0xff]
  %v201 = vld [vmem:[#allocation3] sm:$0xff]
  %v202 = vld [vmem:[#allocation2] sm:$0xff]
  %203 = vmatprep.subr.mxu0 0.0
  %204 = vmatpush1.msra.mxu0 %v185
  %205 = vmatprep.subr.mxu0 0.0
  %206 = vmatpush1.msra.mxu0 %v186
  %207 = vmatprep.subr.mxu0 0.0
  %208 = vmatpush1.msra.mxu0 %v187
  %209 = vmatprep.subr.mxu0 0.0
  %210 = vmatpush1.msra.mxu0 %v188
  %211 = vmatprep.subr.mxu0 0.0
  %212 = vmatpush1.msra.mxu0 %v189
  %213 = vmatprep.subr.mxu0 0.0
  %214 = vmatpush1.msra.mxu0 %v190
  %215 = vmatprep.subr.mxu0 0.0
  %216 = vmatpush1.msra.mxu0 %v191
  %217 = vmatprep.subr.mxu0 0.0
  %218 = vmatpush1.msra.mxu0 %v192
  %219 = vmatprep.subr.mxu0 0.0
  %220 = vmatpush1.msra.mxu0 %v193
  %221 = vmatprep.subr.mxu0 0.0
  %222 = vmatpush1.msra.mxu0 %v194
  %223 = vmatprep.subr.mxu0 0.0
  %224 = vmatpush1.msra.mxu0 %v195
  %225 = vmatprep.subr.mxu0 0.0
  %226 = vmatpush1.msra.mxu0 %v196
  %227 = vmatprep.subr.mxu0 0.0
  %228 = vmatpush1.msra.mxu0 %v197
  %229 = vmatprep.subr.mxu0 0.0
  %230 = vmatpush1.msra.mxu0 %v198
  %231 = vmatprep.subr.mxu0 0.0
  %232 = vmatpush1.msra.mxu0 %v199
  %233 = vmatprep.subr.mxu0 0.0
  %234 = vmatpush1.msra.mxu0 %v200
  %235 = vmatprep.subr.mxu0 0.0
  %236 = vmatpush1.msra.mxu0 0.0
  %237 = vmatprep.subr.mxu0 0.0
  %238 = vmatpush1.msra.mxu0 0.0
  %239 = vmatprep.subr.mxu0 0.0
  %240 = vmatpush1.msra.mxu0 0.0
  %241 = vmatprep.subr.mxu0 0.0
  %242 = vmatpush1.msra.mxu0 0.0
  %243 = vmatprep.subr.mxu0 0.0
  %244 = vmatpush1.msra.mxu0 0.0
  %245 = vmatprep.subr.mxu0 0.0
  %246 = vmatpush1.msra.mxu0 0.0
  %247 = vmatprep.subr.mxu0 0.0
  %248 = vmatpush1.msra.mxu0 0.0
  %249 = vmatprep.subr.mxu0 0.0
  %250 = vmatpush1.msra.mxu0 0.0
  %251 = vmatprep.subr.mxu0 0.0
  %252 = vmatpush1.msra.mxu0 0.0
  %253 = vmatprep.subr.mxu0 0.0
  %254 = vmatpush1.msra.mxu0 0.0
  %255 = vmatprep.subr.mxu0 0.0
  %256 = vmatpush1.msra.mxu0 0.0
  %257 = vmatprep.subr.mxu0 0.0
  %258 = vmatpush1.msra.mxu0 0.0
  %259 = vmatprep.subr.mxu0 0.0
  %260 = vmatpush1.msra.mxu0 0.0
  %261 = vmatprep.subr.mxu0 0.0
  %262 = vmatpush1.msra.mxu0 0.0
  %263 = vmatprep.subr.mxu0 0.0
  %264 = vmatpush1.msra.mxu0 0.0
  %265 = vmatprep.subr.mxu0 0.0
  %266 = vmatpush1.msra.mxu0 0.0
  %267 = vmatprep.mubr.f32.mxu0 0.0
  %268 = vmatmul.mubr.f32.gmra.mrb[0].mxu0 %v201
  %v269 = vpop.f32.mrb[0].mxu0
  %v270 = vadd.f32 0.0, %v269
  %v271 = vpop.f32.mrb[0].mxu0
  %272 = vdwg.mxu0
  %v273 = vadd.f32 %v202, %v270
  %v274 = vtanh.pop %v273
  %v275 = vld [vmem:[#allocation2 + $0x8] sm:$0xff]
  %276 = vmatprep.subr.mxu0 0.0
  %277 = vmatpush1.msra.mxu0 %v185
  %278 = vmatprep.subr.mxu0 0.0
  %279 = vmatpush1.msra.mxu0 %v186
  %280 = vmatprep.subr.mxu0 0.0
  %281 = vmatpush1.msra.mxu0 %v187
  %282 = vmatprep.subr.mxu0 0.0
  %283 = vmatpush1.msra.mxu0 %v188
  %284 = vmatprep.subr.mxu0 0.0
  %285 = vmatpush1.msra.mxu0 %v189
  %286 = vmatprep.subr.mxu0 0.0
  %287 = vmatpush1.msra.mxu0 %v190
  %288 = vmatprep.subr.mxu0 0.0
  %289 = vmatpush1.msra.mxu0 %v191
  %290 = vmatprep.subr.mxu0 0.0
  %291 = vmatpush1.msra.mxu0 %v192
  %292 = vmatprep.subr.mxu0 0.0
  %293 = vmatpush1.msra.mxu0 %v193
  %294 = vmatprep.subr.mxu0 0.0
  %295 = vmatpush1.msra.mxu0 %v194
  %296 = vmatprep.subr.mxu0 0.0
  %297 = vmatpush1.msra.mxu0 %v195
  %298 = vmatprep.subr.mxu0 0.0
  %299 = vmatpush1.msra.mxu0 %v196
  %300 = vmatprep.subr.mxu0 0.0
  %301 = vmatpush1.msra.mxu0 %v197
  %302 = vmatprep.subr.mxu0 0.0
  %303 = vmatpush1.msra.mxu0 %v198
  %304 = vmatprep.subr.mxu0 0.0
  %305 = vmatpush1.msra.mxu0 %v199
  %306 = vmatprep.subr.mxu0 0.0
  %307 = vmatpush1.msra.mxu0 %v200
  %308 = vmatprep.subr.mxu0 0.0
  %309 = vmatpush1.msra.mxu0 0.0
  %310 = vmatprep.subr.mxu0 0.0
  %311 = vmatpush1.msra.mxu0 0.0
  %312 = vmatprep.subr.mxu0 0.0
  %313 = vmatpush1.msra.mxu0 0.0
  %314 = vmatprep.subr.mxu0 0.0
  %315 = vmatpush1.msra.mxu0 0.0
  %316 = vmatprep.subr.mxu0 0.0
  %317 = vmatpush1.msra.mxu0 0.0
  %318 = vmatprep.subr.mxu0 0.0
  %319 = vmatpush1.msra.mxu0 0.0
  %320 = vmatprep.subr.mxu0 0.0
  %321 = vmatpush1.msra.mxu0 0.0
  %322 = vmatprep.subr.mxu0 0.0
  %323 = vmatpush1.msra.mxu0 0.0
  %324 = vmatprep.subr.mxu0 0.0
  %325 = vmatpush1.msra.mxu0 0.0
  %326 = vmatprep.subr.mxu0 0.0
  %327 = vmatpush1.msra.mxu0 0.0
  %328 = vmatprep.subr.mxu0 0.0
  %329 = vmatpush1.msra.mxu0 0.0
  %330 = vmatprep.subr.mxu0 0.0
  %331 = vmatpush1.msra.mxu0 0.0
  %332 = vmatprep.subr.mxu0 0.0
  %333 = vmatpush1.msra.mxu0 0.0
  %334 = vmatprep.subr.mxu0 0.0
  %335 = vmatpush1.msra.mxu0 0.0
  %336 = vmatprep.subr.mxu0 0.0
  %337 = vmatpush1.msra.mxu0 0.0
  %338 = vmatprep.subr.mxu0 0.0
  %339 = vmatpush1.msra.mxu0 0.0
  %340 = vmatprep.mubr.f32.mxu0 0.0
  %341 = vmatmul.mubr.f32.gmra.mrb[0].mxu0 %v274
  %v342 = vpop.f32.mrb[0].mxu0
  %v343 = vadd.f32 0.0, %v342
  %v344 = vpop.f32.mrb[0].mxu0
  %345 = vdwg.mxu0
  %v346 = vadd.f32 %v275, %v343
  %v347 = vtanh.pop %v346
  %v348 = vld [vmem:[#allocation2 + $0x10] sm:$0xff]
  %349 = vmatprep.subr.mxu0 0.0
  %350 = vmatpush1.msra.mxu0 %v185
  %351 = vmatprep.subr.mxu0 0.0
  %352 = vmatpush1.msra.mxu0 %v186
  %353 = vmatprep.subr.mxu0 0.0
  %354 = vmatpush1.msra.mxu0 %v187
  %355 = vmatprep.subr.mxu0 0.0
  %356 = vmatpush1.msra.mxu0 %v188
  %357 = vmatprep.subr.mxu0 0.0
  %358 = vmatpush1.msra.mxu0 %v189
  %359 = vmatprep.subr.mxu0 0.0
  %360 = vmatpush1.msra.mxu0 %v190
  %361 = vmatprep.subr.mxu0 0.0
  %362 = vmatpush1.msra.mxu0 %v191
  %363 = vmatprep.subr.mxu0 0.0
  %364 = vmatpush1.msra.mxu0 %v192
  %365 = vmatprep.subr.mxu0 0.0
  %366 = vmatpush1.msra.mxu0 %v193
  %367 = vmatprep.subr.mxu0 0.0
  %368 = vmatpush1.msra.mxu0 %v194
  %369 = vmatprep.subr.mxu0 0.0
  %370 = vmatpush1.msra.mxu0 %v195
  %371 = vmatprep.subr.mxu0 0.0
  %372 = vmatpush1.msra.mxu0 %v196
  %373 = vmatprep.subr.mxu0 0.0
  %374 = vmatpush1.msra.mxu0 %v197
  %375 = vmatprep.subr.mxu0 0.0
  %376 = vmatpush1.msra.mxu0 %v198
  %377 = vmatprep.subr.mxu0 0.0
  %378 = vmatpush1.msra.mxu0 %v199
  %379 = vmatprep.subr.mxu0 0.0
  %380 = vmatpush1.msra.mxu0 %v200
  %381 = vmatprep.subr.mxu0 0.0
  %382 = vmatpush1.msra.mxu0 0.0
  %383 = vmatprep.subr.mxu0 0.0
  %384 = vmatpush1.msra.mxu0 0.0
  %385 = vmatprep.subr.mxu0 0.0
  %386 = vmatpush1.msra.mxu0 0.0
  %387 = vmatprep.subr.mxu0 0.0
  %388 = vmatpush1.msra.mxu0 0.0
  %389 = vmatprep.subr.mxu0 0.0
  %390 = vmatpush1.msra.mxu0 0.0
  %391 = vmatprep.subr.mxu0 0.0
  %392 = vmatpush1.msra.mxu0 0.0
  %393 = vmatprep.subr.mxu0 0.0
  %394 = vmatpush1.msra.mxu0 0.0
  %395 = vmatprep.subr.mxu0 0.0
  %396 = vmatpush1.msra.mxu0 0.0
  %397 = vmatprep.subr.mxu0 0.0
  %398 = vmatpush1.msra.mxu0 0.0
  %399 = vmatprep.subr.mxu0 0.0
  %400 = vmatpush1.msra.mxu0 0.0
  %401 = vmatprep.subr.mxu0 0.0
  %402 = vmatpush1.msra.mxu0 0.0
  %403 = vmatprep.subr.mxu0 0.0
  %404 = vmatpush1.msra.mxu0 0.0
  %405 = vmatprep.subr.mxu0 0.0
  %406 = vmatpush1.msra.mxu0 0.0
  %407 = vmatprep.subr.mxu0 0.0
  %408 = vmatpush1.msra.mxu0 0.0
  %409 = vmatprep.subr.mxu0 0.0
  %410 = vmatpush1.msra.mxu0 0.0
  %411 = vmatprep.subr.mxu0 0.0
  %412 = vmatpush1.msra.mxu0 0.0
  %413 = vmatprep.mubr.f32.mxu0 0.0
  %414 = vmatmul.mubr.f32.gmra.mrb[0].mxu0 %v347
  %v415 = vpop.f32.mrb[0].mxu0
  %v416 = vadd.f32 0.0, %v415
  %v417 = vpop.f32.mrb[0].mxu0
  %418 = vdwg.mxu0
  %v419 = vadd.f32 %v348, %v416
  %v420 = vtanh.pop %v419
  %v421 = vld [vmem:[#allocation2 + $0x18] sm:$0xff]
  %422 = vmatprep.subr.mxu0 0.0
  %423 = vmatpush1.msra.mxu0 %v185
  %424 = vmatprep.subr.mxu0 0.0
  %425 = vmatpush1.msra.mxu0 %v186
  %426 = vmatprep.subr.mxu0 0.0
  %427 = vmatpush1.msra.mxu0 %v187
  %428 = vmatprep.subr.mxu0 0.0
  %429 = vmatpush1.msra.mxu0 %v188
  %430 = vmatprep.subr.mxu0 0.0
  %431 = vmatpush1.msra.mxu0 %v189
  %432 = vmatprep.subr.mxu0 0.0
  %433 = vmatpush1.msra.mxu0 %v190
  %434 = vmatprep.subr.mxu0 0.0
  %435 = vmatpush1.msra.mxu0 %v191
  %436 = vmatprep.subr.mxu0 0.0
  %437 = vmatpush1.msra.mxu0 %v192
  %438 = vmatprep.subr.mxu0 0.0
  %439 = vmatpush1.msra.mxu0 %v193
  %440 = vmatprep.subr.mxu0 0.0
  %441 = vmatpush1.msra.mxu0 %v194
  %442 = vmatprep.subr.mxu0 0.0
  %443 = vmatpush1.msra.mxu0 %v195
  %444 = vmatprep.subr.mxu0 0.0
  %445 = vmatpush1.msra.mxu0 %v196
  %446 = vmatprep.subr.mxu0 0.0
  %447 = vmatpush1.msra.mxu0 %v197
  %448 = vmatprep.subr.mxu0 0.0
  %449 = vmatpush1.msra.mxu0 %v198
  %450 = vmatprep.subr.mxu0 0.0
  %451 = vmatpush1.msra.mxu0 %v199
  %452 = vmatprep.subr.mxu0 0.0
  %453 = vmatpush1.msra.mxu0 %v200
  %454 = vmatprep.subr.mxu0 0.0
  %455 = vmatpush1.msra.mxu0 0.0
  %456 = vmatprep.subr.mxu0 0.0
  %457 = vmatpush1.msra.mxu0 0.0
  %458 = vmatprep.subr.mxu0 0.0
  %459 = vmatpush1.msra.mxu0 0.0
  %460 = vmatprep.subr.mxu0 0.0
  %461 = vmatpush1.msra.mxu0 0.0
  %462 = vmatprep.subr.mxu0 0.0
  %463 = vmatpush1.msra.mxu0 0.0
  %464 = vmatprep.subr.mxu0 0.0
  %465 = vmatpush1.msra.mxu0 0.0
  %466 = vmatprep.subr.mxu0 0.0
  %467 = vmatpush1.msra.mxu0 0.0
  %468 = vmatprep.subr.mxu0 0.0
  %469 = vmatpush1.msra.mxu0 0.0
  %470 = vmatprep.subr.mxu0 0.0
  %471 = vmatpush1.msra.mxu0 0.0
  %472 = vmatprep.subr.mxu0 0.0
  %473 = vmatpush1.msra.mxu0 0.0
  %474 = vmatprep.subr.mxu0 0.0
  %475 = vmatpush1.msra.mxu0 0.0
  %476 = vmatprep.subr.mxu0 0.0
  %477 = vmatpush1.msra.mxu0 0.0
  %478 = vmatprep.subr.mxu0 0.0
  %479 = vmatpush1.msra.mxu0 0.0
  %480 = vmatprep.subr.mxu0 0.0
  %481 = vmatpush1.msra.mxu0 0.0
  %482 = vmatprep.subr.mxu0 0.0
  %483 = vmatpush1.msra.mxu0 0.0
  %484 = vmatprep.subr.mxu0 0.0
  %485 = vmatpush1.msra.mxu0 0.0
  %486 = vmatprep.mubr.f32.mxu0 0.0
  %487 = vmatmul.mubr.f32.gmra.mrb[0].mxu0 %v420
  %v488 = vpop.f32.mrb[0].mxu0
  %v489 = vadd.f32 0.0, %v488
  %v490 = vpop.f32.mrb[0].mxu0
  %491 = vdwg.mxu0
  %v492 = vadd.f32 %v421, %v489
  %v493 = vtanh.pop %v492
  %v494 = vld [vmem:[#allocation2 + $0x20] sm:$0xff]
  %495 = vmatprep.subr.mxu0 0.0
  %496 = vmatpush1.msra.mxu0 %v185
  %497 = vmatprep.subr.mxu0 0.0
  %498 = vmatpush1.msra.mxu0 %v186
  %499 = vmatprep.subr.mxu0 0.0
  %500 = vmatpush1.msra.mxu0 %v187
  %501 = vmatprep.subr.mxu0 0.0
  %502 = vmatpush1.msra.mxu0 %v188
  %503 = vmatprep.subr.mxu0 0.0
  %504 = vmatpush1.msra.mxu0 %v189
  %505 = vmatprep.subr.mxu0 0.0
  %506 = vmatpush1.msra.mxu0 %v190
  %507 = vmatprep.subr.mxu0 0.0
  %508 = vmatpush1.msra.mxu0 %v191
  %509 = vmatprep.subr.mxu0 0.0
  %510 = vmatpush1.msra.mxu0 %v192
  %511 = vmatprep.subr.mxu0 0.0
  %512 = vmatpush1.msra.mxu0 %v193
  %513 = vmatprep.subr.mxu0 0.0
  %514 = vmatpush1.msra.mxu0 %v194
  %515 = vmatprep.subr.mxu0 0.0
  %516 = vmatpush1.msra.mxu0 %v195
  %517 = vmatprep.subr.mxu0 0.0
  %518 = vmatpush1.msra.mxu0 %v196
  %519 = vmatprep.subr.mxu0 0.0
  %520 = vmatpush1.msra.mxu0 %v197
  %521 = vmatprep.subr.mxu0 0.0
  %522 = vmatpush1.msra.mxu0 %v198
  %523 = vmatprep.subr.mxu0 0.0
  %524 = vmatpush1.msra.mxu0 %v199
  %525 = vmatprep.subr.mxu0 0.0
  %526 = vmatpush1.msra.mxu0 %v200
  %527 = vmatprep.subr.mxu0 0.0
  %528 = vmatpush1.msra.mxu0 0.0
  %529 = vmatprep.subr.mxu0 0.0
  %530 = vmatpush1.msra.mxu0 0.0
  %531 = vmatprep.subr.mxu0 0.0
  %532 = vmatpush1.msra.mxu0 0.0
  %533 = vmatprep.subr.mxu0 0.0
  %534 = vmatpush1.msra.mxu0 0.0
  %535 = vmatprep.subr.mxu0 0.0
  %536 = vmatpush1.msra.mxu0 0.0
  %537 = vmatprep.subr.mxu0 0.0
  %538 = vmatpush1.msra.mxu0 0.0
  %539 = vmatprep.subr.mxu0 0.0
  %540 = vmatpush1.msra.mxu0 0.0
  %541 = vmatprep.subr.mxu0 0.0
  %542 = vmatpush1.msra.mxu0 0.0
  %543 = vmatprep.subr.mxu0 0.0
  %544 = vmatpush1.msra.mxu0 0.0
  %545 = vmatprep.subr.mxu0 0.0
  %546 = vmatpush1.msra.mxu0 0.0
  %547 = vmatprep.subr.mxu0 0.0
  %548 = vmatpush1.msra.mxu0 0.0
  %549 = vmatprep.subr.mxu0 0.0
  %550 = vmatpush1.msra.mxu0 0.0
  %551 = vmatprep.subr.mxu0 0.0
  %552 = vmatpush1.msra.mxu0 0.0
  %553 = vmatprep.subr.mxu0 0.0
  %554 = vmatpush1.msra.mxu0 0.0
  %555 = vmatprep.subr.mxu0 0.0
  %556 = vmatpush1.msra.mxu0 0.0
  %557 = vmatprep.subr.mxu0 0.0
  %558 = vmatpush1.msra.mxu0 0.0
  %559 = vmatprep.mubr.f32.mxu0 0.0
  %560 = vmatmul.mubr.f32.gmra.mrb[0].mxu0 %v493
  %v561 = vpop.f32.mrb[0].mxu0
  %v562 = vadd.f32 0.0, %v561
  %v563 = vpop.f32.mrb[0].mxu0
  %564 = vdwg.mxu0
  %v565 = vadd.f32 %v494, %v562
  %v566 = vtanh.pop %v565
  %v567 = vld [vmem:[#allocation2 + $0x28] sm:$0xff]
  %568 = vmatprep.subr.mxu0 0.0
  %569 = vmatpush1.msra.mxu0 %v185
  %570 = vmatprep.subr.mxu0 0.0
  %571 = vmatpush1.msra.mxu0 %v186
  %572 = vmatprep.subr.mxu0 0.0
  %573 = vmatpush1.msra.mxu0 %v187
  %574 = vmatprep.subr.mxu0 0.0
  %575 = vmatpush1.msra.mxu0 %v188
  %576 = vmatprep.subr.mxu0 0.0
  %577 = vmatpush1.msra.mxu0 %v189
  %578 = vmatprep.subr.mxu0 0.0
  %579 = vmatpush1.msra.mxu0 %v190
  %580 = vmatprep.subr.mxu0 0.0
  %581 = vmatpush1.msra.mxu0 %v191
  %582 = vmatprep.subr.mxu0 0.0
  %583 = vmatpush1.msra.mxu0 %v192
  %584 = vmatprep.subr.mxu0 0.0
  %585 = vmatpush1.msra.mxu0 %v193
  %586 = vmatprep.subr.mxu0 0.0
  %587 = vmatpush1.msra.mxu0 %v194
  %588 = vmatprep.subr.mxu0 0.0
  %589 = vmatpush1.msra.mxu0 %v195
  %590 = vmatprep.subr.mxu0 0.0
  %591 = vmatpush1.msra.mxu0 %v196
  %592 = vmatprep.subr.mxu0 0.0
  %593 = vmatpush1.msra.mxu0 %v197
  %594 = vmatprep.subr.mxu0 0.0
  %595 = vmatpush1.msra.mxu0 %v198
  %596 = vmatprep.subr.mxu0 0.0
  %597 = vmatpush1.msra.mxu0 %v199
  %598 = vmatprep.subr.mxu0 0.0
  %599 = vmatpush1.msra.mxu0 %v200
  %600 = vmatprep.subr.mxu0 0.0
  %601 = vmatpush1.msra.mxu0 0.0
  %602 = vmatprep.subr.mxu0 0.0
  %603 = vmatpush1.msra.mxu0 0.0
  %604 = vmatprep.subr.mxu0 0.0
  %605 = vmatpush1.msra.mxu0 0.0
  %606 = vmatprep.subr.mxu0 0.0
  %607 = vmatpush1.msra.mxu0 0.0
  %608 = vmatprep.subr.mxu0 0.0
  %609 = vmatpush1.msra.mxu0 0.0
  %610 = vmatprep.subr.mxu0 0.0
  %611 = vmatpush1.msra.mxu0 0.0
  %612 = vmatprep.subr.mxu0 0.0
  %613 = vmatpush1.msra.mxu0 0.0
  %614 = vmatprep.subr.mxu0 0.0
  %615 = vmatpush1.msra.mxu0 0.0
  %616 = vmatprep.subr.mxu0 0.0
  %617 = vmatpush1.msra.mxu0 0.0
  %618 = vmatprep.subr.mxu0 0.0
  %619 = vmatpush1.msra.mxu0 0.0
  %620 = vmatprep.subr.mxu0 0.0
  %621 = vmatpush1.msra.mxu0 0.0
  %622 = vmatprep.subr.mxu0 0.0
  %623 = vmatpush1.msra.mxu0 0.0
  %624 = vmatprep.subr.mxu0 0.0
  %625 = vmatpush1.msra.mxu0 0.0
  %626 = vmatprep.subr.mxu0 0.0
  %627 = vmatpush1.msra.mxu0 0.0
  %628 = vmatprep.subr.mxu0 0.0
  %629 = vmatpush1.msra.mxu0 0.0
  %630 = vmatprep.subr.mxu0 0.0
  %631 = vmatpush1.msra.mxu0 0.0
  %632 = vmatprep.mubr.f32.mxu0 0.0
  %633 = vmatmul.mubr.f32.gmra.mrb[0].mxu0 %v566
  %v634 = vpop.f32.mrb[0].mxu0
  %v635 = vadd.f32 0.0, %v634
  %v636 = vpop.f32.mrb[0].mxu0
  %637 = vdwg.mxu0
  %v638 = vadd.f32 %v567, %v635
  %v639 = vtanh.pop %v638
  %v640 = vld [vmem:[#allocation2 + $0x30] sm:$0xff]
  %641 = vmatprep.subr.mxu0 0.0
  %642 = vmatpush1.msra.mxu0 %v185
  %643 = vmatprep.subr.mxu0 0.0
  %644 = vmatpush1.msra.mxu0 %v186
  %645 = vmatprep.subr.mxu0 0.0
  %646 = vmatpush1.msra.mxu0 %v187
  %647 = vmatprep.subr.mxu0 0.0
  %648 = vmatpush1.msra.mxu0 %v188
  %649 = vmatprep.subr.mxu0 0.0
  %650 = vmatpush1.msra.mxu0 %v189
  %651 = vmatprep.subr.mxu0 0.0
  %652 = vmatpush1.msra.mxu0 %v190
  %653 = vmatprep.subr.mxu0 0.0
  %654 = vmatpush1.msra.mxu0 %v191
  %655 = vmatprep.subr.mxu0 0.0
  %656 = vmatpush1.msra.mxu0 %v192
  %657 = vmatprep.subr.mxu0 0.0
  %658 = vmatpush1.msra.mxu0 %v193
  %659 = vmatprep.subr.mxu0 0.0
  %660 = vmatpush1.msra.mxu0 %v194
  %661 = vmatprep.subr.mxu0 0.0
  %662 = vmatpush1.msra.mxu0 %v195
  %663 = vmatprep.subr.mxu0 0.0
  %664 = vmatpush1.msra.mxu0 %v196
  %665 = vmatprep.subr.mxu0 0.0
  %666 = vmatpush1.msra.mxu0 %v197
  %667 = vmatprep.subr.mxu0 0.0
  %668 = vmatpush1.msra.mxu0 %v198
  %669 = vmatprep.subr.mxu0 0.0
  %670 = vmatpush1.msra.mxu0 %v199
  %671 = vmatprep.subr.mxu0 0.0
  %672 = vmatpush1.msra.mxu0 %v200
  %673 = vmatprep.subr.mxu0 0.0
  %674 = vmatpush1.msra.mxu0 0.0
  %675 = vmatprep.subr.mxu0 0.0
  %676 = vmatpush1.msra.mxu0 0.0
  %677 = vmatprep.subr.mxu0 0.0
  %678 = vmatpush1.msra.mxu0 0.0
  %679 = vmatprep.subr.mxu0 0.0
  %680 = vmatpush1.msra.mxu0 0.0
  %681 = vmatprep.subr.mxu0 0.0
  %682 = vmatpush1.msra.mxu0 0.0
  %683 = vmatprep.subr.mxu0 0.0
  %684 = vmatpush1.msra.mxu0 0.0
  %685 = vmatprep.subr.mxu0 0.0
  %686 = vmatpush1.msra.mxu0 0.0
  %687 = vmatprep.subr.mxu0 0.0
  %688 = vmatpush1.msra.mxu0 0.0
  %689 = vmatprep.subr.mxu0 0.0
  %690 = vmatpush1.msra.mxu0 0.0
  %691 = vmatprep.subr.mxu0 0.0
  %692 = vmatpush1.msra.mxu0 0.0
  %693 = vmatprep.subr.mxu0 0.0
  %694 = vmatpush1.msra.mxu0 0.0
  %695 = vmatprep.subr.mxu0 0.0
  %696 = vmatpush1.msra.mxu0 0.0
  %697 = vmatprep.subr.mxu0 0.0
  %698 = vmatpush1.msra.mxu0 0.0
  %699 = vmatprep.subr.mxu0 0.0
  %700 = vmatpush1.msra.mxu0 0.0
  %701 = vmatprep.subr.mxu0 0.0
  %702 = vmatpush1.msra.mxu0 0.0
  %703 = vmatprep.subr.mxu0 0.0
  %704 = vmatpush1.msra.mxu0 0.0
  %705 = vmatprep.mubr.f32.mxu0 0.0
  %706 = vmatmul.mubr.f32.gmra.mrb[0].mxu0 %v639
  %v707 = vpop.f32.mrb[0].mxu0
  %v708 = vadd.f32 0.0, %v707
  %v709 = vpop.f32.mrb[0].mxu0
  %710 = vdwg.mxu0
  %v711 = vadd.f32 %v640, %v708
  %v712 = vtanh.pop %v711
  %v713 = vld [vmem:[#allocation2 + $0x38] sm:$0xff]
  %714 = vmatprep.subr.mxu0 0.0
  %715 = vmatpush1.msra.mxu0 %v185
  %716 = vmatprep.subr.mxu0 0.0
  %717 = vmatpush1.msra.mxu0 %v186
  %718 = vmatprep.subr.mxu0 0.0
  %719 = vmatpush1.msra.mxu0 %v187
  %720 = vmatprep.subr.mxu0 0.0
  %721 = vmatpush1.msra.mxu0 %v188
  %722 = vmatprep.subr.mxu0 0.0
  %723 = vmatpush1.msra.mxu0 %v189
  %724 = vmatprep.subr.mxu0 0.0
  %725 = vmatpush1.msra.mxu0 %v190
  %726 = vmatprep.subr.mxu0 0.0
  %727 = vmatpush1.msra.mxu0 %v191
  %728 = vmatprep.subr.mxu0 0.0
  %729 = vmatpush1.msra.mxu0 %v192
  %730 = vmatprep.subr.mxu0 0.0
  %731 = vmatpush1.msra.mxu0 %v193
  %732 = vmatprep.subr.mxu0 0.0
  %733 = vmatpush1.msra.mxu0 %v194
  %734 = vmatprep.subr.mxu0 0.0
  %735 = vmatpush1.msra.mxu0 %v195
  %736 = vmatprep.subr.mxu0 0.0
  %737 = vmatpush1.msra.mxu0 %v196
  %738 = vmatprep.subr.mxu0 0.0
  %739 = vmatpush1.msra.mxu0 %v197
  %740 = vmatprep.subr.mxu0 0.0
  %741 = vmatpush1.msra.mxu0 %v198
  %742 = vmatprep.subr.mxu0 0.0
  %743 = vmatpush1.msra.mxu0 %v199
  %744 = vmatprep.subr.mxu0 0.0
  %745 = vmatpush1.msra.mxu0 %v200
  %746 = vmatprep.subr.mxu0 0.0
  %747 = vmatpush1.msra.mxu0 0.0
  %748 = vmatprep.subr.mxu0 0.0
  %749 = vmatpush1.msra.mxu0 0.0
  %750 = vmatprep.subr.mxu0 0.0
  %751 = vmatpush1.msra.mxu0 0.0
  %752 = vmatprep.subr.mxu0 0.0
  %753 = vmatpush1.msra.mxu0 0.0
  %754 = vmatprep.subr.mxu0 0.0
  %755 = vmatpush1.msra.mxu0 0.0
  %756 = vmatprep.subr.mxu0 0.0
  %757 = vmatpush1.msra.mxu0 0.0
  %758 = vmatprep.subr.mxu0 0.0
  %759 = vmatpush1.msra.mxu0 0.0
  %760 = vmatprep.subr.mxu0 0.0
  %761 = vmatpush1.msra.mxu0 0.0
  %762 = vmatprep.subr.mxu0 0.0
  %763 = vmatpush1.msra.mxu0 0.0
  %764 = vmatprep.subr.mxu0 0.0
  %765 = vmatpush1.msra.mxu0 0.0
  %766 = vmatprep.subr.mxu0 0.0
  %767 = vmatpush1.msra.mxu0 0.0
  %768 = vmatprep.subr.mxu0 0.0
  %769 = vmatpush1.msra.mxu0 0.0
  %770 = vmatprep.subr.mxu0 0.0
  %771 = vmatpush1.msra.mxu0 0.0
  %772 = vmatprep.subr.mxu0 0.0
  %773 = vmatpush1.msra.mxu0 0.0
  %774 = vmatprep.subr.mxu0 0.0
  %775 = vmatpush1.msra.mxu0 0.0
  %776 = vmatprep.subr.mxu0 0.0
  %777 = vmatpush1.msra.mxu0 0.0
  %778 = vmatprep.mubr.f32.mxu0 0.0
  %779 = vmatmul.mubr.f32.gmra.mrb[0].mxu0 %v712
  %v780 = vpop.f32.mrb[0].mxu0
  %v781 = vadd.f32 0.0, %v780
  %v782 = vpop.f32.mrb[0].mxu0
  %783 = vdwg.mxu0
  %v784 = vadd.f32 %v713, %v781
  %v785 = vtanh.pop %v784
  %786 = vst [vmem:[#allocation3] sm:$0xff] %v785
  // Predicated region
  $region30: #{rnn_forward.1} parent=0 // pred_check
    %p787 = pneg %p23
  $region31: #{rnn_forward.1} parent=0 // pred_check_branch
    %789 = sbr.rel (%p787) target = $region33
  $region32: #{rnn_forward.1} parent=0 // pred_region
    %v790 = vld [vmem:[#allocation3] sm:$0xff]
    %v791 = vld [vmem:[%s4] sm:$0xff]
    %v792 = vld [vmem:[%s4 + $0x8] sm:$0xff]
    %v793 = vld [vmem:[%s4 + $0x10] sm:$0xff]
    %v794 = vld [vmem:[%s4 + $0x18] sm:$0xff]
    %v795 = vld [vmem:[%s4 + $0x20] sm:$0xff]
    %v796 = vld [vmem:[%s4 + $0x28] sm:$0xff]
    %v797 = vld [vmem:[%s4 + $0x30] sm:$0xff]
    %v798 = vld [vmem:[%s4 + $0x38] sm:$0xff]
    %v799 = vld [vmem:[%s4 + $0x40] sm:$0xff]
    %v800 = vld [vmem:[%s4 + $0x48] sm:$0xff]
    %v801 = vld [vmem:[%s4 + $0x50] sm:$0xff]
    %v802 = vld [vmem:[%s4 + $0x58] sm:$0xff]
    %v803 = vld [vmem:[%s4 + $0x60] sm:$0xff]
    %v804 = vld [vmem:[%s4 + $0x68] sm:$0xff]
    %v805 = vld [vmem:[%s4 + $0x70] sm:$0xff]
    %v806 = vld [vmem:[%s4 + $0x78] sm:$0xff]
    %v807 = vld [vmem:[%s5] sm:$0x1]
    %v809 = vlaneseq
    %v810 = vshrl.u32 %v809, 7
    %v811 = vsub.s32 0, %v810
    %v812 = vrot.slane %v807, %v811
    %814 = vmatprep.subr.mxu0 0.0
    %815 = vmatpush1.msra.mxu0 %v791
    %816 = vmatprep.subr.mxu0 0.0
    %817 = vmatpush1.msra.mxu0 %v792
    %818 = vmatprep.subr.mxu0 0.0
    %819 = vmatpush1.msra.mxu0 %v793
    %820 = vmatprep.subr.mxu0 0.0
    %821 = vmatpush1.msra.mxu0 %v794
    %822 = vmatprep.subr.mxu0 0.0
    %823 = vmatpush1.msra.mxu0 %v795
    %824 = vmatprep.subr.mxu0 0.0
    %825 = vmatpush1.msra.mxu0 %v796
    %826 = vmatprep.subr.mxu0 0.0
    %827 = vmatpush1.msra.mxu0 %v797
    %828 = vmatprep.subr.mxu0 0.0
    %829 = vmatpush1.msra.mxu0 %v798
    %830 = vmatprep.subr.mxu0 0.0
    %831 = vmatpush1.msra.mxu0 %v799
    %832 = vmatprep.subr.mxu0 0.0
    %833 = vmatpush1.msra.mxu0 %v800
    %834 = vmatprep.subr.mxu0 0.0
    %835 = vmatpush1.msra.mxu0 %v801
    %836 = vmatprep.subr.mxu0 0.0
    %837 = vmatpush1.msra.mxu0 %v802
    %838 = vmatprep.subr.mxu0 0.0
    %839 = vmatpush1.msra.mxu0 %v803
    %840 = vmatprep.subr.mxu0 0.0
    %841 = vmatpush1.msra.mxu0 %v804
    %842 = vmatprep.subr.mxu0 0.0
    %843 = vmatpush1.msra.mxu0 %v805
    %844 = vmatprep.subr.mxu0 0.0
    %845 = vmatpush1.msra.mxu0 %v806
    %846 = vmatprep.subr.mxu0 0.0
    %847 = vmatpush1.msra.mxu0 0.0
    %848 = vmatprep.subr.mxu0 0.0
    %849 = vmatpush1.msra.mxu0 0.0
    %850 = vmatprep.subr.mxu0 0.0
    %851 = vmatpush1.msra.mxu0 0.0
    %852 = vmatprep.subr.mxu0 0.0
    %853 = vmatpush1.msra.mxu0 0.0
    %854 = vmatprep.subr.mxu0 0.0
    %855 = vmatpush1.msra.mxu0 0.0
    %856 = vmatprep.subr.mxu0 0.0
    %857 = vmatpush1.msra.mxu0 0.0
    %858 = vmatprep.subr.mxu0 0.0
    %859 = vmatpush1.msra.mxu0 0.0
    %860 = vmatprep.subr.mxu0 0.0
    %861 = vmatpush1.msra.mxu0 0.0
    %862 = vmatprep.subr.mxu0 0.0
    %863 = vmatpush1.msra.mxu0 0.0
    %864 = vmatprep.subr.mxu0 0.0
    %865 = vmatpush1.msra.mxu0 0.0
    %866 = vmatprep.subr.mxu0 0.0
    %867 = vmatpush1.msra.mxu0 0.0
    %868 = vmatprep.subr.mxu0 0.0
    %869 = vmatpush1.msra.mxu0 0.0
    %870 = vmatprep.subr.mxu0 0.0
    %871 = vmatpush1.msra.mxu0 0.0
    %872 = vmatprep.subr.mxu0 0.0
    %873 = vmatpush1.msra.mxu0 0.0
    %874 = vmatprep.subr.mxu0 0.0
    %875 = vmatpush1.msra.mxu0 0.0
    %876 = vmatprep.subr.mxu0 0.0
    %877 = vmatpush1.msra.mxu0 0.0
    %878 = vmatprep.mubr.f32.mxu0 0.0
    %879 = vmatmul.mubr.f32.gmra.mrb[0].mxu0 %v790
    %v880 = vpop.f32.mrb[0].mxu0
    %v881 = vadd.f32 %v812, %v880
    %v882 = vpop.f32.mrb[0].mxu0
    %883 = vdwg.mxu0
    %884 = vst [vmem:[%s6] sm:$0xff] %v881
  $region33: #{rnn_forward.1} parent=0 // pred_fallthru
    _
  // Predicated region
  $region34: #{rnn_forward.1} parent=0 // pred_check
    _
  $region35: #{rnn_forward.1} parent=0 // pred_check_branch
    %886 = sbr.rel (0) target = $region37
  $region36: #{rnn_forward.1} parent=0 // pred_region
    _
  $region37: #{rnn_forward.1} parent=0 // pred_fallthru
    _
  // Predicated region
  $region38: #{rnn_forward.1} parent=0 // pred_check
    _
  $region39: #{rnn_forward.1} parent=0 // pred_check_branch
    %888 = sbr.rel (0) target = $region41
  $region40: #{rnn_forward.1} parent=0 // pred_region
    _
  $region41: #{rnn_forward.1} parent=0 // pred_fallthru
    _

</llo_original>
